<compile_context>
chip_gen: v7x
topology: tpu7x:2x2x1
jax: 0.10.0
libtpu: 0.0.40
codegen_flags: <defaults>
</compile_context>

<pallas_src>
import jax
import jax.numpy as jnp
from jax.experimental import pallas as pl
from jax.experimental.pallas import tpu as pltpu


def _identity_dma_kernel(x_hbm, o_hbm, sem):
    # Whole-array HBM->HBM DMA: no VMEM staging, no vld/vst through vregs,
    # no grid-step overhead.  Identity permutation == straight copy.
    cp = pltpu.make_async_copy(x_hbm, o_hbm, sem)
    cp.start()
    cp.wait()


def _pallas_identity_copy(x):
    """One HBM->HBM DMA copy of the full array (any shape / dtype)."""
    return pl.pallas_call(
        _identity_dma_kernel,
        out_shape=jax.ShapeDtypeStruct(x.shape, x.dtype),
        in_specs=[pl.BlockSpec(memory_space=pl.ANY)],
        out_specs=pl.BlockSpec(memory_space=pl.ANY),
        scratch_shapes=[pltpu.SemaphoreType.DMA(())],
    )(x)


def abstract_permuter_forward(x, reverse: bool = False, *, use_kernel: bool = False):
    """Identity permuter forward.

    `reverse` is a no-op: the identity permutation is its own inverse.

    By default this returns `x` directly -- an identity permutation needs zero
    HBM traffic, so launching any kernel would only add a full read+write
    pass.  Set `use_kernel=True` to exercise the Pallas DMA-copy path (the
    materializing variant a caller might want when it needs a fresh buffer).
    """
    del reverse  # identity permutation is its own inverse
    if not use_kernel:
        return x
    return _pallas_identity_copy(x)


if __name__ == "__main__":
    key = jax.random.PRNGKey(0)
    B, S = 2, 256  # small batch of code-index sequences (e.g. 16x16 latents)
    x = jax.random.randint(key, (B, S), minval=0, maxval=1024, dtype=jnp.int32)

    # Default fast path: pure pass-through, no kernel launch, zero HBM traffic.
    y_fast = abstract_permuter_forward(x, reverse=False)
    y_fast_rev = abstract_permuter_forward(x, reverse=True)

    # Kernel path: single whole-array HBM->HBM DMA.
    y_kern = abstract_permuter_forward(x, reverse=False, use_kernel=True)
    y_kern_rev = abstract_permuter_forward(x, reverse=True, use_kernel=True)

    # Ragged sequence length (24x24 latent grid = 576, not a multiple of 128):
    # the DMA path needs no padding and no trailing slice.
    x_ragged = jax.random.randint(
        jax.random.PRNGKey(1), (2, 576), minval=0, maxval=1024, dtype=jnp.int32
    )
    y_ragged = abstract_permuter_forward(x_ragged, use_kernel=True)

    jax.block_until_ready((y_fast, y_fast_rev, y_kern, y_kern_rev, y_ragged))

    assert y_fast.shape == x.shape and y_fast.dtype == x.dtype
    assert y_kern.shape == x.shape and y_kern.dtype == x.dtype
    assert y_ragged.shape == x_ragged.shape and y_ragged.dtype == x_ragged.dtype
    assert bool(jnp.all(y_fast == x)) and bool(jnp.all(y_fast_rev == x))
    assert bool(jnp.all(y_kern == x)) and bool(jnp.all(y_kern_rev == x))
    assert bool(jnp.all(y_ragged == x_ragged))
    print("KERNEL_OK")
</pallas_src>

<mosaic_0001>
module attributes {stable_mosaic.version = 11 : i64} {
  func.func @_identity_dma_kernel(%arg0: memref<2x256xi32, #tpu.memory_space<any>>, %arg1: memref<2x256xi32, #tpu.memory_space<any>>, %arg2: memref<!tpu.dma_semaphore, #tpu.memory_space<semaphore_mem>>) attributes {dimension_semantics = [], scalar_prefetch = 0 : i64, scratch_operands = 1 : i64, tpu.core_type = #tpu.core_type<tc>} {
    tpu.enqueue_dma source(%arg0 : memref<2x256xi32, #tpu.memory_space<any>>) target(%arg1 : memref<2x256xi32, #tpu.memory_space<any>>) target_semaphore(%arg2 : memref<!tpu.dma_semaphore, #tpu.memory_space<semaphore_mem>>)
    tpu.wait_dma2 semaphore(%arg2 : memref<!tpu.dma_semaphore, #tpu.memory_space<semaphore_mem>>) src(%arg0 : memref<2x256xi32, #tpu.memory_space<any>>) dst(%arg1 : memref<2x256xi32, #tpu.memory_space<any>>)
    return
  }
}

</mosaic_0001>

<llo_original>
// kernel: tpu_custom_call.1
$region0: #{tpu_custom_call.1}
  #allocation0 [shape = 'u32[]', space=smem, size = 0x4, offset = 0x4, fixed_abs, tag = 'smem constant byte address 0x4 - core index']
  #allocation1 [shape = 'u32[144,128]{1,0:T(1,128)}', space=vmem, size = 0x12000, scoped, tag = 'internal scratch']
  #allocation2 [shape = 's32[1]{0}', space=sflag, size = 0x4, scoped, tag = 'scratch operand']
  #allocation3 [shape = 's32[]', space=sflag, size = 0x4, offset = 0, fixed_abs, tag = 'sflag constant byte address 0x0 - dummy sync flag']
  #allocation4 [shape = 'u32[0]{0}', space=smem, size = 0, offset = 0, fixed_abs, tag = 'smem constant byte address 0x0 - null']
  %s0 = inlined_call_operand.hbm [shape: s32[2,256], index: 0, kind: input, shape index: {}]
  %s1 = inlined_call_operand.hbm [shape: s32[2,256], index: 1, kind: output, shape index: {}]
  %s2 = sld [smem:[#allocation0]]
  $region2: #{tpu_custom_call.1} parent=0
    _
  %s4 = ssub.s32 1, %s2
  %s5 = scalar_select 0, %s4, %s2
  %s7 = sshll.u32 1, 14
  %s8 = sxor.u32 4294967295, %s7
  %s11 = sshll.u32 3, 24
  %s12 = sxor.u32 4294967295, %s11
  %s13 = sand.u32 0, %s12
  %s15 = sor.u32 %s13, 0
  %18 = dma.general %s0, 64, %s1, [#allocation2], [#allocation3], [#allocation4], %s15, 0
  %s19 = smul.u32 2, 1
  %s20 = smul.u32 %s19, 2
  %s21 = sshll.u32 %s20, 4
  %22 = dma.done [#allocation2], %s21
  %23 = vsyncmov [#allocation2]
  %s24 = vpop.sfrf %23
  %p25 = scmp.eq.s32.totalorder %s24, 0
  %p26 = pneg %p25
  %28 = shalt.err (%p26)

</llo_original>
